<compile_context>
chip_gen: v7x
topology: tpu7x:2x2x1
jax: 0.10.0
libtpu: 0.0.40
codegen_flags: <defaults>
</compile_context>

<pallas_src>
import functools

import jax
import jax.numpy as jnp
from jax.experimental import pallas as pl
from jax.experimental.pallas import tpu as pltpu


def _dsc_kernel(x_ref, mdw_ref, pw_ref, out_ref, *, N, C, COUT, H, W, K):
    # x_ref   : (N*C, H*W)        batch packed into sublanes, pixels on lanes
    # mdw_ref : (K*K, N*C, H*W)   per-tap (validity mask * depthwise weight), grid-invariant
    # pw_ref  : (COUT, C+1)       pointwise weights with BN scale folded; last col = BN bias
    # out_ref : (N*COUT, H*W)
    HW = H * W
    NC = N * C
    p = K // 2

    x = x_ref[...].astype(jnp.float32)      # (N*C, HW)
    pw = pw_ref[...].astype(jnp.float32)    # (COUT, C+1)

    # ---- depthwise conv: one lane roll (XLU) + one FMA (VPU) per tap ----
    # 'same' zero padding and the per-channel tap weight are pre-folded into mdw, which
    # also kills the flat-HW roll wrap-around.
    acc = jnp.zeros((NC, HW), jnp.float32)
    for ki in range(K):
        for kj in range(K):
            idx = ki * K + kj
            off = (ki - p) * W + (kj - p)            # flat shift for this tap
            shifted = x if off == 0 else pltpu.roll(x, shift=(-off) % HW, axis=1)
            acc = acc + shifted * mdw_ref[idx]

    # ---- pointwise 1x1 conv (BN scale pre-folded) + BN bias init + ReLU, per image ----
    # Bias broadcast hoisted out of both loops (JAX does not CSE broadcast_in_dim).
    bias_bc = jnp.broadcast_to(pw[:, C:C + 1], (COUT, HW))
    for n in range(N):
        y = bias_bc
        base = n * C
        for c in range(C):
            y = y + pw[:, c:c + 1] * acc[base + c:base + c + 1, :]
        # Aligned (COUT, HW) sublane slab -> unmasked lane-dense store.
        out_ref[n * COUT:(n + 1) * COUT, :] = jnp.maximum(y, 0.0).astype(out_ref.dtype)


def prepare_params(dw_w, pw_w, gamma, beta, run_mean, run_var, *, N, H, W, eps=1e-5):
    """One-time fold of static parameters (inference). Returns (mdw, pw_aug).

    dw_w: (C, K, K) depthwise weights; pw_w: (COUT, C) pointwise weights;
    gamma/beta/run_mean/run_var: (COUT,) BatchNorm2d params / running stats.
    Both Conv2d layers are bias=False (per the reference module).
    """
    C, K, _ = dw_w.shape
    COUT = pw_w.shape[0]
    HW = H * W
    p = K // 2

    # Fold BN (inference) scale into the pointwise weights; append BN bias as last column.
    scale = gamma / jnp.sqrt(run_var + eps)                         # (COUT,)
    pw_scaled = pw_w.astype(jnp.float32) * scale[:, None]           # (COUT, C)
    bias = (beta - run_mean * scale)[:, None]                       # (COUT, 1)
    pw_aug = jnp.concatenate([pw_scaled, bias], axis=1).astype(jnp.float32)  # (COUT, C+1)

    # Per-tap 'same'-padding validity masks (also kill roll wrap-around), pre-multiplied
    # by the per-channel depthwise tap weights and tiled per image -> (K*K, N*C, HW).
    row = jnp.arange(HW, dtype=jnp.int32) // W
    col = jnp.arange(HW, dtype=jnp.int32) % W
    masks = []
    for ki in range(K):
        for kj in range(K):
            di, dj = ki - p, kj - p
            valid = ((row + di >= 0) & (row + di < H) &
                     (col + dj >= 0) & (col + dj < W))
            masks.append(valid.astype(jnp.float32))
    masks = jnp.stack(masks, axis=0)                                # (K*K, HW)

    dw_flat = dw_w.reshape(C, K * K).astype(jnp.float32)            # (C, K*K)
    dw_tiled = jnp.tile(dw_flat, (N, 1))                            # (N*C, K*K)
    mdw = masks[:, None, :] * dw_tiled.T[:, :, None]                # (K*K, N*C, HW)
    return mdw, pw_aug


@jax.jit
def depthwise_separable_conv(x_nchw, mdw, pw_aug):
    """x_nchw: (N, C, H, W). Returns (N, COUT, H, W). mdw/pw_aug from prepare_params."""
    N, C, H, W = x_nchw.shape
    KK, NC, HW = mdw.shape
    COUT = pw_aug.shape[0]
    K = int(round(KK ** 0.5))

    # Free reshape only (row-major contiguous): no pads, no transposes per call.
    x_flat = x_nchw.reshape(N * C, HW)

    kernel = functools.partial(_dsc_kernel, N=N, C=C, COUT=COUT, H=H, W=W, K=K)

    out_flat = pl.pallas_call(
        kernel,
        out_shape=jax.ShapeDtypeStruct((N * COUT, HW), x_nchw.dtype),
        # Single block covering the whole batch (empty grid): the problem is
        # overhead-bound at this size, so no grid steps and no per-step DMA.
        in_specs=[
            pl.BlockSpec((N * C, HW), lambda: (0, 0)),
            pl.BlockSpec((KK, NC, HW), lambda: (0, 0, 0)),
            pl.BlockSpec((COUT, C + 1), lambda: (0, 0)),
        ],
        out_specs=pl.BlockSpec((N * COUT, HW), lambda: (0, 0)),
    )(x_flat, mdw, pw_aug)

    # Back to PyTorch's NCHW convention (free reshape).
    return out_flat.reshape(N, COUT, H, W)


if __name__ == "__main__":
    # Module config: chin=4, chout=8, kernel_size=3
    N, CHIN, H, W = 2, 4, 16, 16
    CHOUT, K = 8, 3
    pad = K // 2

    key = jax.random.PRNGKey(0)
    kx, kdw, kpw, kg, kb, km, kv = jax.random.split(key, 7)

    x = jax.random.normal(kx, (N, CHIN, H, W), dtype=jnp.float32)
    # nn.Conv2d(chin, chin, K, groups=chin, bias=False) weight: (chin, 1, K, K) -> (chin, K, K)
    dw_w = jax.random.normal(kdw, (CHIN, K, K), dtype=jnp.float32) * 0.1
    # nn.Conv2d(chin, chout, 1, bias=False) weight: (chout, chin, 1, 1) -> (chout, chin)
    pw_w = jax.random.normal(kpw, (CHOUT, CHIN), dtype=jnp.float32) * 0.1
    # BatchNorm2d(chout) parameters / running stats (inference semantics)
    gamma = 1.0 + 0.1 * jax.random.normal(kg, (CHOUT,), dtype=jnp.float32)
    beta = 0.1 * jax.random.normal(kb, (CHOUT,), dtype=jnp.float32)
    run_mean = 0.1 * jax.random.normal(km, (CHOUT,), dtype=jnp.float32)
    run_var = jnp.abs(1.0 + 0.1 * jax.random.normal(kv, (CHOUT,), dtype=jnp.float32))

    # One-time parameter fold (static at inference), then the per-call fused kernel.
    mdw, pw_aug = prepare_params(dw_w, pw_w, gamma, beta, run_mean, run_var, N=N, H=H, W=W)
    out = depthwise_separable_conv(x, mdw, pw_aug)
    out = jax.block_until_ready(out)

    # Silent correctness check against a pure-JAX NCHW reference.
    xp = jnp.pad(x, ((0, 0), (0, 0), (pad, pad), (pad, pad)))
    ref_dw = jnp.zeros((N, CHIN, H, W), jnp.float32)
    for ki in range(K):
        for kj in range(K):
            ref_dw = ref_dw + xp[:, :, ki:ki + H, kj:kj + W] * dw_w[None, :, ki, kj, None, None]
    ref = jnp.einsum("nchw,oc->nohw", ref_dw, pw_w)
    scale = gamma / jnp.sqrt(run_var + 1e-5)
    bias = beta - run_mean * scale
    ref = jnp.maximum(ref * scale[None, :, None, None] + bias[None, :, None, None], 0.0)
    assert jnp.allclose(out, ref, atol=1e-4, rtol=1e-4), float(jnp.max(jnp.abs(out - ref)))

    print("KERNEL_OK")
</pallas_src>

<mosaic_0001>
module attributes {stable_mosaic.version = 11 : i64} {
  func.func @_dsc_kernel(%arg0: memref<8x256xf32, #tpu.memory_space<vmem>>, %arg1: memref<9x8x256xf32, #tpu.memory_space<vmem>>, %arg2: memref<8x5xf32, #tpu.memory_space<vmem>>, %arg3: memref<16x256xf32, #tpu.memory_space<vmem>>) attributes {dimension_semantics = [], scalar_prefetch = 0 : i64, scratch_operands = 0 : i64, tpu.core_type = #tpu.core_type<tc>} {
    %c0 = arith.constant 0 : index
    %c0_0 = arith.constant 0 : index
    %0 = vector.load %arg0[%c0, %c0_0] : memref<8x256xf32, #tpu.memory_space<vmem>>, vector<8x256xf32>
    %c0_1 = arith.constant 0 : index
    %c0_2 = arith.constant 0 : index
    %1 = vector.load %arg2[%c0_1, %c0_2] : memref<8x5xf32, #tpu.memory_space<vmem>>, vector<8x5xf32>
    %cst = arith.constant 0.000000e+00 : f32
    %2 = vector.broadcast %cst : f32 to vector<8x256xf32>
    %c17_i32 = arith.constant 17 : i32
    %3 = tpu.dynamic_rotate %0 by %c17_i32 dim 1 : vector<8x256xf32>, i32 -> vector<8x256xf32>
    %c0_3 = arith.constant 0 : index
    %c0_4 = arith.constant 0 : index
    %c0_5 = arith.constant 0 : index
    %4 = vector.load %arg1[%c0_3, %c0_4, %c0_5] : memref<9x8x256xf32, #tpu.memory_space<vmem>>, vector<1x8x256xf32>
    %5 = vector.shape_cast %4 : vector<1x8x256xf32> to vector<8x256xf32>
    %6 = arith.mulf %3, %5 : vector<8x256xf32>
    %7 = arith.addf %2, %6 : vector<8x256xf32>
    %c16_i32 = arith.constant 16 : i32
    %8 = tpu.dynamic_rotate %0 by %c16_i32 dim 1 : vector<8x256xf32>, i32 -> vector<8x256xf32>
    %c1 = arith.constant 1 : index
    %c0_6 = arith.constant 0 : index
    %c0_7 = arith.constant 0 : index
    %9 = vector.load %arg1[%c1, %c0_6, %c0_7] : memref<9x8x256xf32, #tpu.memory_space<vmem>>, vector<1x8x256xf32>
    %10 = vector.shape_cast %9 : vector<1x8x256xf32> to vector<8x256xf32>
    %11 = arith.mulf %8, %10 : vector<8x256xf32>
    %12 = arith.addf %7, %11 : vector<8x256xf32>
    %c15_i32 = arith.constant 15 : i32
    %13 = tpu.dynamic_rotate %0 by %c15_i32 dim 1 : vector<8x256xf32>, i32 -> vector<8x256xf32>
    %c2 = arith.constant 2 : index
    %c0_8 = arith.constant 0 : index
    %c0_9 = arith.constant 0 : index
    %14 = vector.load %arg1[%c2, %c0_8, %c0_9] : memref<9x8x256xf32, #tpu.memory_space<vmem>>, vector<1x8x256xf32>
    %15 = vector.shape_cast %14 : vector<1x8x256xf32> to vector<8x256xf32>
    %16 = arith.mulf %13, %15 : vector<8x256xf32>
    %17 = arith.addf %12, %16 : vector<8x256xf32>
    %c1_i32 = arith.constant 1 : i32
    %18 = tpu.dynamic_rotate %0 by %c1_i32 dim 1 : vector<8x256xf32>, i32 -> vector<8x256xf32>
    %c3 = arith.constant 3 : index
    %c0_10 = arith.constant 0 : index
    %c0_11 = arith.constant 0 : index
    %19 = vector.load %arg1[%c3, %c0_10, %c0_11] : memref<9x8x256xf32, #tpu.memory_space<vmem>>, vector<1x8x256xf32>
    %20 = vector.shape_cast %19 : vector<1x8x256xf32> to vector<8x256xf32>
    %21 = arith.mulf %18, %20 : vector<8x256xf32>
    %22 = arith.addf %17, %21 : vector<8x256xf32>
    %c4 = arith.constant 4 : index
    %c0_12 = arith.constant 0 : index
    %c0_13 = arith.constant 0 : index
    %23 = vector.load %arg1[%c4, %c0_12, %c0_13] : memref<9x8x256xf32, #tpu.memory_space<vmem>>, vector<1x8x256xf32>
    %24 = vector.shape_cast %23 : vector<1x8x256xf32> to vector<8x256xf32>
    %25 = arith.mulf %0, %24 : vector<8x256xf32>
    %26 = arith.addf %22, %25 : vector<8x256xf32>
    %c255_i32 = arith.constant 255 : i32
    %27 = tpu.dynamic_rotate %0 by %c255_i32 dim 1 : vector<8x256xf32>, i32 -> vector<8x256xf32>
    %c5 = arith.constant 5 : index
    %c0_14 = arith.constant 0 : index
    %c0_15 = arith.constant 0 : index
    %28 = vector.load %arg1[%c5, %c0_14, %c0_15] : memref<9x8x256xf32, #tpu.memory_space<vmem>>, vector<1x8x256xf32>
    %29 = vector.shape_cast %28 : vector<1x8x256xf32> to vector<8x256xf32>
    %30 = arith.mulf %27, %29 : vector<8x256xf32>
    %31 = arith.addf %26, %30 : vector<8x256xf32>
    %c241_i32 = arith.constant 241 : i32
    %32 = tpu.dynamic_rotate %0 by %c241_i32 dim 1 : vector<8x256xf32>, i32 -> vector<8x256xf32>
    %c6 = arith.constant 6 : index
    %c0_16 = arith.constant 0 : index
    %c0_17 = arith.constant 0 : index
    %33 = vector.load %arg1[%c6, %c0_16, %c0_17] : memref<9x8x256xf32, #tpu.memory_space<vmem>>, vector<1x8x256xf32>
    %34 = vector.shape_cast %33 : vector<1x8x256xf32> to vector<8x256xf32>
    %35 = arith.mulf %32, %34 : vector<8x256xf32>
    %36 = arith.addf %31, %35 : vector<8x256xf32>
    %c240_i32 = arith.constant 240 : i32
    %37 = tpu.dynamic_rotate %0 by %c240_i32 dim 1 : vector<8x256xf32>, i32 -> vector<8x256xf32>
    %c7 = arith.constant 7 : index
    %c0_18 = arith.constant 0 : index
    %c0_19 = arith.constant 0 : index
    %38 = vector.load %arg1[%c7, %c0_18, %c0_19] : memref<9x8x256xf32, #tpu.memory_space<vmem>>, vector<1x8x256xf32>
    %39 = vector.shape_cast %38 : vector<1x8x256xf32> to vector<8x256xf32>
    %40 = arith.mulf %37, %39 : vector<8x256xf32>
    %41 = arith.addf %36, %40 : vector<8x256xf32>
    %c239_i32 = arith.constant 239 : i32
    %42 = tpu.dynamic_rotate %0 by %c239_i32 dim 1 : vector<8x256xf32>, i32 -> vector<8x256xf32>
    %c8 = arith.constant 8 : index
    %c0_20 = arith.constant 0 : index
    %c0_21 = arith.constant 0 : index
    %43 = vector.load %arg1[%c8, %c0_20, %c0_21] : memref<9x8x256xf32, #tpu.memory_space<vmem>>, vector<1x8x256xf32>
    %44 = vector.shape_cast %43 : vector<1x8x256xf32> to vector<8x256xf32>
    %45 = arith.mulf %42, %44 : vector<8x256xf32>
    %46 = arith.addf %41, %45 : vector<8x256xf32>
    %47 = vector.extract_strided_slice %1 {offsets = [0, 4], sizes = [8, 1], strides = [1, 1]} : vector<8x5xf32> to vector<8x1xf32>
    %48 = vector.shape_cast %47 : vector<8x1xf32> to vector<8x1xf32>
    %49 = vector.broadcast %48 : vector<8x1xf32> to vector<8x256xf32>
    %50 = vector.extract_strided_slice %1 {offsets = [0, 0], sizes = [8, 1], strides = [1, 1]} : vector<8x5xf32> to vector<8x1xf32>
    %51 = vector.extract_strided_slice %46 {offsets = [0, 0], sizes = [1, 256], strides = [1, 1]} : vector<8x256xf32> to vector<1x256xf32>
    %52 = vector.broadcast %50 : vector<8x1xf32> to vector<8x256xf32>
    %53 = vector.broadcast %51 : vector<1x256xf32> to vector<8x256xf32>
    %54 = arith.mulf %52, %53 : vector<8x256xf32>
    %55 = arith.addf %49, %54 : vector<8x256xf32>
    %56 = vector.extract_strided_slice %1 {offsets = [0, 1], sizes = [8, 1], strides = [1, 1]} : vector<8x5xf32> to vector<8x1xf32>
    %57 = vector.extract_strided_slice %46 {offsets = [1, 0], sizes = [1, 256], strides = [1, 1]} : vector<8x256xf32> to vector<1x256xf32>
    %58 = vector.broadcast %56 : vector<8x1xf32> to vector<8x256xf32>
    %59 = vector.broadcast %57 : vector<1x256xf32> to vector<8x256xf32>
    %60 = arith.mulf %58, %59 : vector<8x256xf32>
    %61 = arith.addf %55, %60 : vector<8x256xf32>
    %62 = vector.extract_strided_slice %1 {offsets = [0, 2], sizes = [8, 1], strides = [1, 1]} : vector<8x5xf32> to vector<8x1xf32>
    %63 = vector.extract_strided_slice %46 {offsets = [2, 0], sizes = [1, 256], strides = [1, 1]} : vector<8x256xf32> to vector<1x256xf32>
    %64 = vector.broadcast %62 : vector<8x1xf32> to vector<8x256xf32>
    %65 = vector.broadcast %63 : vector<1x256xf32> to vector<8x256xf32>
    %66 = arith.mulf %64, %65 : vector<8x256xf32>
    %67 = arith.addf %61, %66 : vector<8x256xf32>
    %68 = vector.extract_strided_slice %1 {offsets = [0, 3], sizes = [8, 1], strides = [1, 1]} : vector<8x5xf32> to vector<8x1xf32>
    %69 = vector.extract_strided_slice %46 {offsets = [3, 0], sizes = [1, 256], strides = [1, 1]} : vector<8x256xf32> to vector<1x256xf32>
    %70 = vector.broadcast %68 : vector<8x1xf32> to vector<8x256xf32>
    %71 = vector.broadcast %69 : vector<1x256xf32> to vector<8x256xf32>
    %72 = arith.mulf %70, %71 : vector<8x256xf32>
    %73 = arith.addf %67, %72 : vector<8x256xf32>
    %cst_22 = arith.constant 0.000000e+00 : f32
    %74 = vector.broadcast %cst_22 : f32 to vector<8x256xf32>
    %75 = arith.maximumf %73, %74 : vector<8x256xf32>
    %c0_23 = arith.constant 0 : index
    %c0_24 = arith.constant 0 : index
    %76 = vector.load %arg3[%c0_23, %c0_24] : memref<16x256xf32, #tpu.memory_space<vmem>>, vector<8x256xf32>
    tpu.vector_store %arg3[%c0_23, %c0_24], %75 {strides = array<i32>} : memref<16x256xf32, #tpu.memory_space<vmem>>, vector<8x256xf32>,
    %77 = vector.extract_strided_slice %1 {offsets = [0, 0], sizes = [8, 1], strides = [1, 1]} : vector<8x5xf32> to vector<8x1xf32>
    %78 = vector.extract_strided_slice %46 {offsets = [4, 0], sizes = [1, 256], strides = [1, 1]} : vector<8x256xf32> to vector<1x256xf32>
    %79 = vector.broadcast %77 : vector<8x1xf32> to vector<8x256xf32>
    %80 = vector.broadcast %78 : vector<1x256xf32> to vector<8x256xf32>
    %81 = arith.mulf %79, %80 : vector<8x256xf32>
    %82 = arith.addf %49, %81 : vector<8x256xf32>
    %83 = vector.extract_strided_slice %1 {offsets = [0, 1], sizes = [8, 1], strides = [1, 1]} : vector<8x5xf32> to vector<8x1xf32>
    %84 = vector.extract_strided_slice %46 {offsets = [5, 0], sizes = [1, 256], strides = [1, 1]} : vector<8x256xf32> to vector<1x256xf32>
    %85 = vector.broadcast %83 : vector<8x1xf32> to vector<8x256xf32>
    %86 = vector.broadcast %84 : vector<1x256xf32> to vector<8x256xf32>
    %87 = arith.mulf %85, %86 : vector<8x256xf32>
    %88 = arith.addf %82, %87 : vector<8x256xf32>
    %89 = vector.extract_strided_slice %1 {offsets = [0, 2], sizes = [8, 1], strides = [1, 1]} : vector<8x5xf32> to vector<8x1xf32>
    %90 = vector.extract_strided_slice %46 {offsets = [6, 0], sizes = [1, 256], strides = [1, 1]} : vector<8x256xf32> to vector<1x256xf32>
    %91 = vector.broadcast %89 : vector<8x1xf32> to vector<8x256xf32>
    %92 = vector.broadcast %90 : vector<1x256xf32> to vector<8x256xf32>
    %93 = arith.mulf %91, %92 : vector<8x256xf32>
    %94 = arith.addf %88, %93 : vector<8x256xf32>
    %95 = vector.extract_strided_slice %1 {offsets = [0, 3], sizes = [8, 1], strides = [1, 1]} : vector<8x5xf32> to vector<8x1xf32>
    %96 = vector.extract_strided_slice %46 {offsets = [7, 0], sizes = [1, 256], strides = [1, 1]} : vector<8x256xf32> to vector<1x256xf32>
    %97 = vector.broadcast %95 : vector<8x1xf32> to vector<8x256xf32>
    %98 = vector.broadcast %96 : vector<1x256xf32> to vector<8x256xf32>
    %99 = arith.mulf %97, %98 : vector<8x256xf32>
    %100 = arith.addf %94, %99 : vector<8x256xf32>
    %cst_25 = arith.constant 0.000000e+00 : f32
    %101 = vector.broadcast %cst_25 : f32 to vector<8x256xf32>
    %102 = arith.maximumf %100, %101 : vector<8x256xf32>
    %c8_26 = arith.constant 8 : index
    %c0_27 = arith.constant 0 : index
    %103 = vector.load %arg3[%c8_26, %c0_27] : memref<16x256xf32, #tpu.memory_space<vmem>>, vector<8x256xf32>
    tpu.vector_store %arg3[%c8_26, %c0_27], %102 {strides = array<i32>} : memref<16x256xf32, #tpu.memory_space<vmem>>, vector<8x256xf32>,
    return
  }
}

</mosaic_0001>

<llo_original>
// kernel: depthwise_separable_conv.1
$region0: #{depthwise_separable_conv.1}
  #allocation0 [shape = 'u32[]', space=smem, size = 0x4, offset = 0x4, fixed_abs, tag = 'smem constant byte address 0x4 - core index']
  #allocation1 [shape = 'u32[144,128]{1,0:T(1,128)}', space=vmem, size = 0x12000, scoped, tag = 'internal scratch']
  %s0 = inlined_call_operand.vmem [shape: f32[8,256], index: 0, kind: input, shape index: {}]
  %s1 = inlined_call_operand.vmem [shape: f32[9,8,256], index: 1, kind: input, shape index: {}]
  %s2 = inlined_call_operand.hbm [shape: f32[8,5], index: 2, kind: input, shape index: {}]
  %s3 = inlined_call_operand.vmem [shape: f32[16,256], index: 3, kind: output, shape index: {}]
  %s4 = sld [smem:[#allocation0]]
  $region26: #{depthwise_separable_conv.1} parent=0
    _
  %s6 = ssub.s32 1, %s4
  %s7 = scalar_select 0, %s6, %s4
  $region1: #{depthwise_separable_conv.1} parent=0
    #allocation2 [shape = 'u8[4096]{0}', space=vmem, size = 0x1000, scoped, tag = 'input window, operand 2, single buffered']
    #allocation3 [shape = 's32[1]{0}', space=sflag, size = 0x4, scoped, tag = 'scoped memory for depthwise_separable_conv.1']
    %8 = vsyncpa [#allocation3], 0
    // Predicated region
    $region2: #{depthwise_separable_conv.1} parent=1 // pred_check
      _
    $region3: #{depthwise_separable_conv.1} parent=1 // pred_check_branch
      %10 = sbr.rel (0) target = $region5
    $region4: #{depthwise_separable_conv.1} parent=1 // pred_region
      _
    $region5: #{depthwise_separable_conv.1} parent=1 // pred_fallthru
      _
    // Predicated region
    $region6: #{depthwise_separable_conv.1} parent=1 // pred_check
      _
    $region7: #{depthwise_separable_conv.1} parent=1 // pred_check_branch
      %12 = sbr.rel (0) target = $region9
    $region8: #{depthwise_separable_conv.1} parent=1 // pred_region
      _
    $region9: #{depthwise_separable_conv.1} parent=1 // pred_fallthru
      _
    // Predicated region
    $region10: #{depthwise_separable_conv.1} parent=1 // pred_check
      _
    $region11: #{depthwise_separable_conv.1} parent=1 // pred_check_branch
      %14 = sbr.rel (0) target = $region13
    $region12: #{depthwise_separable_conv.1} parent=1 // pred_region
      %s16 = ssub.s32 128, 128
      %17 = vsyncadd [#allocation3], %s16
      %s19 = sshll.u32 [#allocation2], 4
      %s20 = int_to_ptr.vmem [resolvable:$true] %s19
      %22 = dma.hbm_to_vmem [thread:$0]  %s2, 128, %s20, [#allocation3]
    $region13: #{depthwise_separable_conv.1} parent=1 // pred_fallthru
      _
    // Predicated region
    $region14: #{depthwise_separable_conv.1} parent=1 // pred_check
      _
    $region15: #{depthwise_separable_conv.1} parent=1 // pred_check_branch
      %24 = sbr.rel (0) target = $region17
    $region16: #{depthwise_separable_conv.1} parent=1 // pred_region
      %25 = dma.done [#allocation3], 128
    $region17: #{depthwise_separable_conv.1} parent=1 // pred_fallthru
      _
    %v26 = vld [vmem:[%s0] sm:$0xff]
    %v27 = vld [vmem:[%s0 + $0x8] sm:$0xff]
    %v28 = vld [vmem:[#allocation2] sm:$0xff]
    %29 = vrot.lane.b32.xlu0 %v26, 17
    %v30 = vpop.permute.xlu0 %29
    %31 = vrot.lane.b32.xlu0 %v27, 17
    %v32 = vpop.permute.xlu0 %31
    %v33 = vlaneseq
    %v34 = vand.u32 %v33, 127
    %vm35 = vcmp.lt.s32.totalorder %v34, 17
    %v36 = vsel %vm35, %v30, %v32
    %v37 = vsel %vm35, %v32, %v30
    %v38 = vld [vmem:[%s1] sm:$0xff]
    %v39 = vld [vmem:[%s1 + $0x8] sm:$0xff]
    %v40 = vmul.f32 %v37, %v38
    %v41 = vmul.f32 %v36, %v39
    %v42 = vadd.f32 %v40, 0.0
    %v43 = vadd.f32 %v41, 0.0
    %44 = vrot.lane.b32.xlu0 %v26, 16
    %v45 = vpop.permute.xlu0 %44
    %46 = vrot.lane.b32.xlu0 %v27, 16
    %v47 = vpop.permute.xlu0 %46
    %vm48 = vcmp.lt.s32.totalorder %v34, 16
    %v49 = vsel %vm48, %v45, %v47
    %v50 = vsel %vm48, %v47, %v45
    %s51 = scalar_lea.vmem %s1, 16
    %v52 = vld [vmem:[%s51] sm:$0xff]
    %v53 = vld [vmem:[%s51 + $0x8] sm:$0xff]
    %v54 = vmul.f32 %v50, %v52
    %v55 = vmul.f32 %v49, %v53
    %v56 = vadd.f32 %v42, %v54
    %v57 = vadd.f32 %v43, %v55
    %58 = vrot.lane.b32.xlu0 %v26, 15
    %v59 = vpop.permute.xlu0 %58
    %60 = vrot.lane.b32.xlu0 %v27, 15
    %v61 = vpop.permute.xlu0 %60
    %vm62 = vcmp.lt.s32.totalorder %v34, 15
    %v63 = vsel %vm62, %v59, %v61
    %v64 = vsel %vm62, %v61, %v59
    %s65 = scalar_lea.vmem %s1, 32
    %v66 = vld [vmem:[%s65] sm:$0xff]
    %v67 = vld [vmem:[%s65 + $0x8] sm:$0xff]
    %v68 = vmul.f32 %v64, %v66
    %v69 = vmul.f32 %v63, %v67
    %v70 = vadd.f32 %v56, %v68
    %v71 = vadd.f32 %v57, %v69
    %72 = vrot.lane.b32.xlu0 %v26, 1
    %v73 = vpop.permute.xlu0 %72
    %74 = vrot.lane.b32.xlu0 %v27, 1
    %v75 = vpop.permute.xlu0 %74
    %vm76 = vcmp.lt.s32.totalorder %v34, 1
    %v77 = vsel %vm76, %v73, %v75
    %v78 = vsel %vm76, %v75, %v73
    %s79 = scalar_lea.vmem %s1, 48
    %v80 = vld [vmem:[%s79] sm:$0xff]
    %v81 = vld [vmem:[%s79 + $0x8] sm:$0xff]
    %v82 = vmul.f32 %v78, %v80
    %v83 = vmul.f32 %v77, %v81
    %v84 = vadd.f32 %v70, %v82
    %v85 = vadd.f32 %v71, %v83
    %s86 = scalar_lea.vmem %s1, 64
    %v87 = vld [vmem:[%s86] sm:$0xff]
    %v88 = vld [vmem:[%s86 + $0x8] sm:$0xff]
    %v89 = vmul.f32 %v26, %v87
    %v90 = vmul.f32 %v27, %v88
    %v91 = vadd.f32 %v84, %v89
    %v92 = vadd.f32 %v85, %v90
    %93 = vrot.lane.b32.xlu0 %v26, 127
    %v94 = vpop.permute.xlu0 %93
    %95 = vrot.lane.b32.xlu0 %v27, 127
    %v96 = vpop.permute.xlu0 %95
    %vm97 = vcmp.lt.s32.totalorder %v34, 127
    %v98 = vsel %vm97, %v94, %v96
    %v99 = vsel %vm97, %v96, %v94
    %s100 = scalar_lea.vmem %s1, 80
    %v101 = vld [vmem:[%s100] sm:$0xff]
    %v102 = vld [vmem:[%s100 + $0x8] sm:$0xff]
    %v103 = vmul.f32 %v98, %v101
    %v104 = vmul.f32 %v99, %v102
    %v105 = vadd.f32 %v91, %v103
    %v106 = vadd.f32 %v92, %v104
    %107 = vrot.lane.b32.xlu0 %v26, 113
    %v108 = vpop.permute.xlu0 %107
    %109 = vrot.lane.b32.xlu0 %v27, 113
    %v110 = vpop.permute.xlu0 %109
    %vm111 = vcmp.lt.s32.totalorder %v34, 113
    %v112 = vsel %vm111, %v108, %v110
    %v113 = vsel %vm111, %v110, %v108
    %s114 = scalar_lea.vmem %s1, 96
    %v115 = vld [vmem:[%s114] sm:$0xff]
    %v116 = vld [vmem:[%s114 + $0x8] sm:$0xff]
    %v117 = vmul.f32 %v112, %v115
    %v118 = vmul.f32 %v113, %v116
    %v119 = vadd.f32 %v105, %v117
    %v120 = vadd.f32 %v106, %v118
    %121 = vrot.lane.b32.xlu0 %v26, 112
    %v122 = vpop.permute.xlu0 %121
    %123 = vrot.lane.b32.xlu0 %v27, 112
    %v124 = vpop.permute.xlu0 %123
    %vm125 = vcmp.lt.s32.totalorder %v34, 112
    %v126 = vsel %vm125, %v122, %v124
    %v127 = vsel %vm125, %v124, %v122
    %s128 = scalar_lea.vmem %s1, 112
    %v129 = vld [vmem:[%s128] sm:$0xff]
    %v130 = vld [vmem:[%s128 + $0x8] sm:$0xff]
    %v131 = vmul.f32 %v126, %v129
    %v132 = vmul.f32 %v127, %v130
    %v133 = vadd.f32 %v119, %v131
    %v134 = vadd.f32 %v120, %v132
    %135 = vrot.lane.b32.xlu0 %v26, 111
    %v136 = vpop.permute.xlu0 %135
    %137 = vrot.lane.b32.xlu0 %v27, 111
    %v138 = vpop.permute.xlu0 %137
    %vm139 = vcmp.lt.s32.totalorder %v34, 111
    %v140 = vsel %vm139, %v136, %v138
    %v141 = vsel %vm139, %v138, %v136
    %s142 = scalar_lea.vmem %s1, 128
    %v143 = vld [vmem:[%s142] sm:$0xff]
    %v144 = vld [vmem:[%s142 + $0x8] sm:$0xff]
    %v145 = vmul.f32 %v140, %v143
    %v146 = vmul.f32 %v141, %v144
    %v147 = vadd.f32 %v133, %v145
    %v148 = vadd.f32 %v134, %v146
    %150 = vset.pattern.permute.xlu0 4
    %151 = vperm.xlu0 %150, %v28
    %v152 = vpop.permute.xlu0 %151
    %154 = vset.pattern.permute.xlu0 0
    %155 = vperm.xlu0 %154, %v28
    %v156 = vpop.permute.xlu0 %155
    %v158 = vlaneseq
    %v159 = vshrl.u32 %v158, 7
    %v160 = vsub.s32 0, %v159
    %v161 = vrot.slane %v147, %v160
    %v162 = vlaneseq
    %v163 = vshrl.u32 %v162, 7
    %v164 = vsub.s32 0, %v163
    %v165 = vrot.slane %v148, %v164
    %v166 = vmul.f32 %v156, %v161
    %v167 = vmul.f32 %v156, %v165
    %v168 = vadd.f32 %v152, %v166
    %v169 = vadd.f32 %v152, %v167
    %170 = vset.pattern.permute.xlu0 1
    %171 = vperm.xlu0 %170, %v28
    %v172 = vpop.permute.xlu0 %171
    %v174 = vlaneseq
    %v175 = vshrl.u32 %v174, 7
    %v176 = vsub.s32 1, %v175
    %v177 = vrot.slane %v147, %v176
    %v178 = vlaneseq
    %v179 = vshrl.u32 %v178, 7
    %v180 = vsub.s32 1, %v179
    %v181 = vrot.slane %v148, %v180
    %v182 = vmul.f32 %v172, %v177
    %v183 = vmul.f32 %v172, %v181
    %v184 = vadd.f32 %v168, %v182
    %v185 = vadd.f32 %v169, %v183
    %186 = vset.pattern.permute.xlu0 2
    %187 = vperm.xlu0 %186, %v28
    %v188 = vpop.permute.xlu0 %187
    %v190 = vlaneseq
    %v191 = vshrl.u32 %v190, 7
    %v192 = vsub.s32 2, %v191
    %v193 = vrot.slane %v147, %v192
    %v194 = vlaneseq
    %v195 = vshrl.u32 %v194, 7
    %v196 = vsub.s32 2, %v195
    %v197 = vrot.slane %v148, %v196
    %v198 = vmul.f32 %v188, %v193
    %v199 = vmul.f32 %v188, %v197
    %v200 = vadd.f32 %v184, %v198
    %v201 = vadd.f32 %v185, %v199
    %202 = vset.pattern.permute.xlu0 3
    %203 = vperm.xlu0 %202, %v28
    %v204 = vpop.permute.xlu0 %203
    %v206 = vlaneseq
    %v207 = vshrl.u32 %v206, 7
    %v208 = vsub.s32 3, %v207
    %v209 = vrot.slane %v147, %v208
    %v210 = vlaneseq
    %v211 = vshrl.u32 %v210, 7
    %v212 = vsub.s32 3, %v211
    %v213 = vrot.slane %v148, %v212
    %v214 = vmul.f32 %v204, %v209
    %v215 = vmul.f32 %v204, %v213
    %v216 = vadd.f32 %v200, %v214
    %v217 = vadd.f32 %v201, %v215
    %v218 = vmax.f32 %v216, 0.0
    %v219 = vmax.f32 %v217, 0.0
    %220 = vst [vmem:[%s3] sm:$0xff] %v218
    %221 = vst [vmem:[%s3 + $0x8] sm:$0xff] %v219
    %v222 = vlaneseq
    %v223 = vshrl.u32 %v222, 7
    %v224 = vsub.s32 4, %v223
    %v225 = vrot.slane %v147, %v224
    %v226 = vlaneseq
    %v227 = vshrl.u32 %v226, 7
    %v228 = vsub.s32 4, %v227
    %v229 = vrot.slane %v148, %v228
    %v230 = vmul.f32 %v156, %v225
    %v231 = vmul.f32 %v156, %v229
    %v232 = vadd.f32 %v152, %v230
    %v233 = vadd.f32 %v152, %v231
    %v234 = vlaneseq
    %v235 = vshrl.u32 %v234, 7
    %v236 = vsub.s32 5, %v235
    %v237 = vrot.slane %v147, %v236
    %v238 = vlaneseq
    %v239 = vshrl.u32 %v238, 7
    %v240 = vsub.s32 5, %v239
    %v241 = vrot.slane %v148, %v240
    %v242 = vmul.f32 %v172, %v237
    %v243 = vmul.f32 %v172, %v241
    %v244 = vadd.f32 %v232, %v242
    %v245 = vadd.f32 %v233, %v243
    %v246 = vlaneseq
    %v247 = vshrl.u32 %v246, 7
    %v248 = vsub.s32 6, %v247
    %v249 = vrot.slane %v147, %v248
    %v250 = vlaneseq
    %v251 = vshrl.u32 %v250, 7
    %v252 = vsub.s32 6, %v251
    %v253 = vrot.slane %v148, %v252
    %v254 = vmul.f32 %v188, %v249
    %v255 = vmul.f32 %v188, %v253
    %v256 = vadd.f32 %v244, %v254
    %v257 = vadd.f32 %v245, %v255
    %v258 = vlaneseq
    %v259 = vshrl.u32 %v258, 7
    %v260 = vsub.s32 7, %v259
    %v261 = vrot.slane %v147, %v260
    %v262 = vlaneseq
    %v263 = vshrl.u32 %v262, 7
    %v264 = vsub.s32 7, %v263
    %v265 = vrot.slane %v148, %v264
    %v266 = vmul.f32 %v204, %v261
    %v267 = vmul.f32 %v204, %v265
    %v268 = vadd.f32 %v256, %v266
    %v269 = vadd.f32 %v257, %v267
    %v270 = vmax.f32 %v268, 0.0
    %v271 = vmax.f32 %v269, 0.0
    %272 = vst [vmem:[%s3 + $0x10] sm:$0xff] %v270
    %273 = vst [vmem:[%s3 + $0x18] sm:$0xff] %v271
    // Predicated region
    $region18: #{depthwise_separable_conv.1} parent=1 // pred_check
      _
    $region19: #{depthwise_separable_conv.1} parent=1 // pred_check_branch
      %275 = sbr.rel (0) target = $region21
    $region20: #{depthwise_separable_conv.1} parent=1 // pred_region
      _
    $region21: #{depthwise_separable_conv.1} parent=1 // pred_fallthru
      _
    // Predicated region
    $region22: #{depthwise_separable_conv.1} parent=1 // pred_check
      _
    $region23: #{depthwise_separable_conv.1} parent=1 // pred_check_branch
      %277 = sbr.rel (0) target = $region25
    $region24: #{depthwise_separable_conv.1} parent=1 // pred_region
      _
    $region25: #{depthwise_separable_conv.1} parent=1 // pred_fallthru
      _
    %278 = vsyncpa [#allocation3], 1

</llo_original>
